<compile_context>
chip_gen: v7x
topology: tpu7x:2x2x1
jax: 0.10.0
libtpu: 0.0.40
codegen_flags: <defaults>
</compile_context>

<pallas_src>
import functools

import jax
import jax.numpy as jnp
from jax.experimental import pallas as pl
from jax.experimental.pallas import tpu as pltpu

EPS = 1e-5
LANE = 128


# ----------------------------------------------------------------------------
# small helpers (wrapper-side weight/layout prep, plain XLA)
# ----------------------------------------------------------------------------
def _round_up(n, m):
    return -(-n // m) * m


def _pad_lanes(a, axis, multiple=LANE):
    size = a.shape[axis]
    target = _round_up(size, multiple)
    if target == size:
        return a
    pad = [(0, 0)] * a.ndim
    pad[axis] = (0, target - size)
    return jnp.pad(a, pad)


def _conv_row_matrix(dw, pw_scaled, w_in, w_out, stride, shift):
    """Structured 'conv-row-slab as matmul' weight.

    Returns Wm of shape (3, w_in*Cin, w_out*Cout) with
      Wm[kh, p*Cin + c, j*Cout + d] = sum_kw [p == stride*j + kw - shift]
                                       * dw[kh*3+kw, c] * pw_scaled[c, d]
    so that a row slab (rows on sublanes, lanes = w_in*Cin) matmul'd with
    Wm[kh] applies the 3 column taps, the depthwise weights, the 1x1 conv and
    the (folded-in) BN scale in one MXU op.  Out-of-range column taps simply
    never match -> implicit zero padding.
    """
    cin, cout = pw_scaled.shape
    kw = jnp.arange(3)
    j = jnp.arange(w_out)
    p = jnp.arange(w_in)
    sel = (p[None, None, :] ==
           (stride * j[None, :, None] + kw[:, None, None] - shift))
    sel = sel.astype(pw_scaled.dtype)                       # (3, w_out, w_in)
    dw3 = dw.reshape(3, 3, cin)                             # (kh, kw, c)
    wm = jnp.einsum("wjp,hwc,cd->hpcjd", sel, dw3, pw_scaled)
    return wm.reshape(3, w_in * cin, w_out * cout)


# ----------------------------------------------------------------------------
# Pallas kernel: whole SepConv (both blocks) fused, one image per grid step
# ----------------------------------------------------------------------------
def _sepconv_fused_kernel(xe_ref, xo_ref, w1_ref, b1_ref, w2_ref, b2_ref, o_ref):
    # xe_ref : (1, H1+1, LK)  even rows of zero-padded input, lanes = Wp*Cin (lane-padded)
    # xo_ref : (1, H1+1, LK)  odd  rows
    # w1_ref : (3, LK, L1)    block-1 weights (dw1 (x) pw1 * BN1-scale), one per row tap
    # b1_ref : (1, L1)        block-1 fused BN bias (tiled over W1)
    # w2_ref : (3, L1, L2)    block-2 weights (dw2 (x) pw2 * BN2-scale)
    # b2_ref : (1, L2)        block-2 fused BN bias (tiled over W2)
    # o_ref  : (1, H2, L2)    output, lanes = W2*Cout (lane-padded)
    f32 = jnp.float32
    cdt = w1_ref.dtype                    # MXU compute dtype (bf16 or f32)
    h1 = o_ref.shape[1]

    xe = xe_ref[0].astype(f32)            # (H1+1, LK)
    xo = xo_ref[0].astype(f32)

    # ---- block 1: dw3x3(s=2) + pw1x1 + BN-scale as 3 structured MXU matmuls.
    # Output row i needs padded rows {2i, 2i+1, 2i+2} = even[i], odd[i], even[i+1].
    t = jnp.dot(xe[0:h1, :].astype(cdt), w1_ref[0], preferred_element_type=f32)
    t = t + jnp.dot(xo[0:h1, :].astype(cdt), w1_ref[1], preferred_element_type=f32)
    t = t + jnp.dot(xe[1:h1 + 1, :].astype(cdt), w1_ref[2], preferred_element_type=f32)
    y1 = jnp.maximum(t + b1_ref[...], 0.0)            # (H1, L1) f32: BN bias + ReLU

    # ---- block 2: dw3x3(s=1, pad=1) + pw1x1 + BN-scale.  The intermediate stays
    # on-chip; the +/-1 row halo comes from tiny 0/1 shift matrices on the MXU
    # (out-of-range rows are implicitly zero == the conv's zero padding).
    ri = jax.lax.broadcasted_iota(jnp.int32, (h1, h1), 0)   # output row
    ci = jax.lax.broadcasted_iota(jnp.int32, (h1, h1), 1)   # source row
    s_prev = (ci == ri - 1).astype(f32)                     # picks y1[i-1]
    s_next = (ci == ri + 1).astype(f32)                     # picks y1[i+1]
    y_up = jnp.dot(s_prev, y1, preferred_element_type=f32)
    y_dn = jnp.dot(s_next, y1, preferred_element_type=f32)

    z = jnp.dot(y_up.astype(cdt), w2_ref[0], preferred_element_type=f32)
    z = z + jnp.dot(y1.astype(cdt), w2_ref[1], preferred_element_type=f32)
    z = z + jnp.dot(y_dn.astype(cdt), w2_ref[2], preferred_element_type=f32)
    o_ref[0] = jnp.maximum(z + b2_ref[...], 0.0).astype(o_ref.dtype)


# ----------------------------------------------------------------------------
# Wrapper: NCHW in / NCHW out (PyTorch convention)
# ----------------------------------------------------------------------------
def sepconv_forward(x_nchw, params, *, compute_dtype=jnp.bfloat16):
    n, cin, h, w = x_nchw.shape
    cout = params["pw2"].shape[1]
    assert h % 2 == 0 and w % 2 == 0, "toy kernel assumes even spatial dims"
    hp, wp = h + 2, w + 2
    h1, w1 = (h + 2 - 3) // 2 + 1, (w + 2 - 3) // 2 + 1
    h2, w2 = h1, w1                                   # block 2: stride 1, pad 1

    # ---- fold BN (inference) into the pointwise weights + per-channel bias,
    #      then fold dw (x) pw into one structured matrix per 3x3 row tap.
    s1 = params["g1"] * jax.lax.rsqrt(params["v1"] + EPS)
    c1 = params["b1"] - params["m1"] * s1
    s2 = params["g2"] * jax.lax.rsqrt(params["v2"] + EPS)
    c2 = params["b2"] - params["m2"] * s2
    w1m = _conv_row_matrix(params["dw1"], params["pw1"] * s1[None, :],
                           wp, w1, stride=2, shift=0)   # (3, Wp*Cin, W1*Cin)
    w2m = _conv_row_matrix(params["dw2"], params["pw2"] * s2[None, :],
                           w1, w2, stride=1, shift=1)   # (3, W1*Cin, W2*Cout)
    b1t = jnp.tile(c1, w1)[None, :]                     # (1, W1*Cin)
    b2t = jnp.tile(c2, w2)[None, :]                     # (1, W2*Cout)

    # lane-pad everything to multiples of 128 (MXU / full-lane stores); pads are
    # zero, so the math is exact.
    w1m = _pad_lanes(_pad_lanes(w1m, 1), 2).astype(compute_dtype)
    w2m = _pad_lanes(_pad_lanes(w2m, 1), 2).astype(compute_dtype)
    b1t = _pad_lanes(b1t, 1).astype(jnp.float32)
    b2t = _pad_lanes(b2t, 1).astype(jnp.float32)

    # ---- layout plumbing (wrapper side, plain XLA): NCHW -> NHWC, zero pad,
    #      lanes = Wp*Cin, even/odd row planes so the stride-2 row taps are
    #      contiguous sublane slices inside the kernel.
    x = jnp.transpose(x_nchw, (0, 2, 3, 1))
    xp = jnp.pad(x, ((0, 0), (1, 1), (1, 1), (0, 0))).reshape(n, hp, wp * cin)
    xp = _pad_lanes(xp, 2).astype(compute_dtype)
    xe = xp[:, 0::2, :]                                 # (N, H1+1, LK)
    xo = xp[:, 1::2, :]                                 # (N, H1+1, LK)

    he, lk = xe.shape[1], xe.shape[2]
    l1, l2 = w1m.shape[2], w2m.shape[2]

    flops = int(2 * n * 3 * (h1 * lk * l1 + h2 * l1 * l2))
    bytes_accessed = int(
        (xe.size + xo.size + w1m.size + w2m.size) * xe.dtype.itemsize
        + (b1t.size + b2t.size) * 4 + n * h2 * l2 * 4)

    out = pl.pallas_call(
        _sepconv_fused_kernel,
        out_shape=jax.ShapeDtypeStruct((n, h2, l2), jnp.float32),
        grid=(n,),                       # one image / step; for large images,
                                         # tile rows with a 1-row halo instead.
        in_specs=[
            pl.BlockSpec((1, he, lk), lambda i: (i, 0, 0)),
            pl.BlockSpec((1, he, lk), lambda i: (i, 0, 0)),
            pl.BlockSpec((3, lk, l1), lambda i: (0, 0, 0)),
            pl.BlockSpec((1, l1), lambda i: (0, 0)),
            pl.BlockSpec((3, l1, l2), lambda i: (0, 0, 0)),
            pl.BlockSpec((1, l2), lambda i: (0, 0)),
        ],
        out_specs=pl.BlockSpec((1, h2, l2), lambda i: (i, 0, 0)),
        compiler_params=pltpu.CompilerParams(
            dimension_semantics=("parallel",),
            vmem_limit_bytes=32 * 1024 * 1024),
        cost_estimate=pl.CostEstimate(
            flops=flops, transcendentals=0, bytes_accessed=bytes_accessed),
    )(xe, xo, w1m, b1t, w2m, b2t)

    out = out[:, :, :w2 * cout].reshape(n, h2, w2, cout)
    return jnp.transpose(out, (0, 3, 1, 2))             # back to NCHW


# ----------------------------------------------------------------------------
# Pure-JAX reference (for the correctness check)
# ----------------------------------------------------------------------------
def ref_forward(x_nchw, P):
    def dw_conv(x, w9c, stride):
        c = x.shape[-1]
        w = w9c.reshape(3, 3, c)[:, :, None, :]          # (3,3,1,C) HWIO
        return jax.lax.conv_general_dilated(
            x, w, (stride, stride), ((1, 1), (1, 1)),
            dimension_numbers=("NHWC", "HWIO", "NHWC"), feature_group_count=c)

    def pw_conv(x, w):
        return jnp.einsum("nhwc,cd->nhwd", x, w)

    def bn_relu(x, g, b, m, v):
        return jnp.maximum((x - m) / jnp.sqrt(v + EPS) * g + b, 0.0)

    x = jnp.transpose(x_nchw, (0, 2, 3, 1))
    y = bn_relu(pw_conv(dw_conv(x, P["dw1"], 2), P["pw1"]),
                P["g1"], P["b1"], P["m1"], P["v1"])
    z = bn_relu(pw_conv(dw_conv(y, P["dw2"], 1), P["pw2"]),
                P["g2"], P["b2"], P["m2"], P["v2"])
    return jnp.transpose(z, (0, 3, 1, 2))


# ----------------------------------------------------------------------------
if __name__ == "__main__":
    N, C_in, C_out, H, W = 2, 4, 8, 16, 16

    key = jax.random.PRNGKey(0)
    ks = jax.random.split(key, 13)

    # Deterministic synthetic parameters (shapes from the PyTorch __init__).
    # NOTE: BatchNorm is evaluated in inference mode with these running stats.
    P = {
        "dw1": 0.1 * jax.random.normal(ks[0], (9, C_in), jnp.float32),      # Conv2d(Cin,Cin,3,groups=Cin)
        "pw1": 0.1 * jax.random.normal(ks[1], (C_in, C_in), jnp.float32),   # Conv2d(Cin,Cin,1)
        "g1": 1.0 + 0.1 * jax.random.normal(ks[2], (C_in,), jnp.float32),
        "b1": 0.1 * jax.random.normal(ks[3], (C_in,), jnp.float32),
        "m1": 0.05 * jax.random.normal(ks[4], (C_in,), jnp.float32),
        "v1": 1.0 + 0.1 * jax.random.uniform(ks[5], (C_in,), jnp.float32),
        "dw2": 0.1 * jax.random.normal(ks[6], (9, C_in), jnp.float32),      # Conv2d(Cin,Cin,3,groups=Cin)
        "pw2": 0.1 * jax.random.normal(ks[7], (C_in, C_out), jnp.float32),  # Conv2d(Cin,Cout,1)
        "g2": 1.0 + 0.1 * jax.random.normal(ks[8], (C_out,), jnp.float32),
        "b2": 0.1 * jax.random.normal(ks[9], (C_out,), jnp.float32),
        "m2": 0.05 * jax.random.normal(ks[10], (C_out,), jnp.float32),
        "v2": 1.0 + 0.1 * jax.random.uniform(ks[11], (C_out,), jnp.float32),
    }
    x = jax.random.normal(ks[12], (N, C_in, H, W), jnp.float32)

    ref = jax.block_until_ready(ref_forward(x, P))

    # exact f32 path
    f32_fwd = jax.jit(functools.partial(sepconv_forward, compute_dtype=jnp.float32))
    out_f32 = jax.block_until_ready(f32_fwd(x, P))
    assert out_f32.shape == (N, C_out, H // 2, W // 2), out_f32.shape
    assert jnp.allclose(out_f32, ref, rtol=1e-4, atol=1e-4), \
        float(jnp.max(jnp.abs(out_f32 - ref)))

    # bf16 fast path (v6e/v7x MXU), f32 accumulation; bf16-level tolerance.
    bf16_fwd = jax.jit(functools.partial(sepconv_forward, compute_dtype=jnp.bfloat16))
    out_bf16 = jax.block_until_ready(bf16_fwd(x, P))
    rel_err = float(jnp.max(jnp.abs(out_bf16 - ref)) /
                    (jnp.max(jnp.abs(ref)) + 1e-6))
    assert rel_err < 5e-2, rel_err

    print("KERNEL_OK")
</pallas_src>

<mosaic_0001>
module attributes {stable_mosaic.version = 11 : i64} {
  func.func @_sepconv_fused_kernel(%arg0: i32, %arg1: memref<1x9x128xf32, #tpu.memory_space<vmem>>, %arg2: memref<1x9x128xf32, #tpu.memory_space<vmem>>, %arg3: memref<3x128x128xf32, #tpu.memory_space<vmem>>, %arg4: memref<1x128xf32, #tpu.memory_space<vmem>>, %arg5: memref<3x128x128xf32, #tpu.memory_space<vmem>>, %arg6: memref<1x128xf32, #tpu.memory_space<vmem>>, %arg7: memref<1x8x128xf32, #tpu.memory_space<vmem>>) attributes {dimension_semantics = [#tpu.dimension_semantics<parallel>], iteration_bounds = array<i64: 2>, scalar_prefetch = 0 : i64, scratch_operands = 0 : i64, tpu.core_type = #tpu.core_type<tc>, window_params = [{transform_indices = @transform_0, window_bounds = array<i64: 1, 9, 128>}, {transform_indices = @transform_1, window_bounds = array<i64: 1, 9, 128>}, {pipeline_mode = #tpu.pipeline_mode<synchronous>, transform_indices = @transform_2, window_bounds = array<i64: 3, 128, 128>}, {pipeline_mode = #tpu.pipeline_mode<synchronous>, transform_indices = @transform_3, window_bounds = array<i64: 1, 128>}, {pipeline_mode = #tpu.pipeline_mode<synchronous>, transform_indices = @transform_4, window_bounds = array<i64: 3, 128, 128>}, {pipeline_mode = #tpu.pipeline_mode<synchronous>, transform_indices = @transform_5, window_bounds = array<i64: 1, 128>}, {transform_indices = @transform_6, window_bounds = array<i64: 1, 8, 128>}]} {
    %c0 = arith.constant 0 : index
    %c0_0 = arith.constant 0 : index
    %c0_1 = arith.constant 0 : index
    %0 = vector.load %arg1[%c0, %c0_0, %c0_1] : memref<1x9x128xf32, #tpu.memory_space<vmem>>, vector<1x9x128xf32>
    %1 = vector.shape_cast %0 : vector<1x9x128xf32> to vector<9x128xf32>
    %c0_2 = arith.constant 0 : index
    %c0_3 = arith.constant 0 : index
    %c0_4 = arith.constant 0 : index
    %2 = vector.load %arg2[%c0_2, %c0_3, %c0_4] : memref<1x9x128xf32, #tpu.memory_space<vmem>>, vector<1x9x128xf32>
    %3 = vector.shape_cast %2 : vector<1x9x128xf32> to vector<9x128xf32>
    %4 = vector.extract_strided_slice %1 {offsets = [0, 0], sizes = [8, 128], strides = [1, 1]} : vector<9x128xf32> to vector<8x128xf32>
    %c0_5 = arith.constant 0 : index
    %c0_6 = arith.constant 0 : index
    %c0_7 = arith.constant 0 : index
    %5 = vector.load %arg3[%c0_5, %c0_6, %c0_7] : memref<3x128x128xf32, #tpu.memory_space<vmem>>, vector<1x128x128xf32>
    %6 = vector.shape_cast %5 : vector<1x128x128xf32> to vector<128x128xf32>
    %cst = arith.constant dense<0.000000e+00> : vector<8x128xf32>
    %7 = tpu.matmul %4, %6, %cst {dimension_numbers = #tpu.dot_dimension_numbers<[1], [0], [0], [1], [0, 0, 1, 1], [], []>} : vector<8x128xf32>, vector<128x128xf32>, vector<8x128xf32> -> vector<8x128xf32>
    %8 = vector.extract_strided_slice %3 {offsets = [0, 0], sizes = [8, 128], strides = [1, 1]} : vector<9x128xf32> to vector<8x128xf32>
    %c1 = arith.constant 1 : index
    %c0_8 = arith.constant 0 : index
    %c0_9 = arith.constant 0 : index
    %9 = vector.load %arg3[%c1, %c0_8, %c0_9] : memref<3x128x128xf32, #tpu.memory_space<vmem>>, vector<1x128x128xf32>
    %10 = vector.shape_cast %9 : vector<1x128x128xf32> to vector<128x128xf32>
    %cst_10 = arith.constant dense<0.000000e+00> : vector<8x128xf32>
    %11 = tpu.matmul %8, %10, %cst_10 {dimension_numbers = #tpu.dot_dimension_numbers<[1], [0], [0], [1], [0, 0, 1, 1], [], []>} : vector<8x128xf32>, vector<128x128xf32>, vector<8x128xf32> -> vector<8x128xf32>
    %12 = arith.addf %7, %11 : vector<8x128xf32>
    %13 = vector.extract_strided_slice %1 {offsets = [1, 0], sizes = [8, 128], strides = [1, 1]} : vector<9x128xf32> to vector<8x128xf32>
    %c2 = arith.constant 2 : index
    %c0_11 = arith.constant 0 : index
    %c0_12 = arith.constant 0 : index
    %14 = vector.load %arg3[%c2, %c0_11, %c0_12] : memref<3x128x128xf32, #tpu.memory_space<vmem>>, vector<1x128x128xf32>
    %15 = vector.shape_cast %14 : vector<1x128x128xf32> to vector<128x128xf32>
    %cst_13 = arith.constant dense<0.000000e+00> : vector<8x128xf32>
    %16 = tpu.matmul %13, %15, %cst_13 {dimension_numbers = #tpu.dot_dimension_numbers<[1], [0], [0], [1], [0, 0, 1, 1], [], []>} : vector<8x128xf32>, vector<128x128xf32>, vector<8x128xf32> -> vector<8x128xf32>
    %17 = arith.addf %12, %16 : vector<8x128xf32>
    %c0_14 = arith.constant 0 : index
    %c0_15 = arith.constant 0 : index
    %18 = vector.load %arg4[%c0_14, %c0_15] : memref<1x128xf32, #tpu.memory_space<vmem>>, vector<1x128xf32>
    %19 = vector.broadcast %18 : vector<1x128xf32> to vector<8x128xf32>
    %20 = arith.addf %17, %19 : vector<8x128xf32>
    %cst_16 = arith.constant 0.000000e+00 : f32
    %21 = vector.broadcast %cst_16 : f32 to vector<8x128xf32>
    %22 = arith.maximumf %20, %21 : vector<8x128xf32>
    %23 = tpu.iota {dimensions = array<i32: 0>} : vector<8x8xi32>
    %24 = tpu.iota {dimensions = array<i32: 1>} : vector<8x8xi32>
    %c1_i32 = arith.constant 1 : i32
    %25 = vector.broadcast %c1_i32 : i32 to vector<8x8xi32>
    %26 = arith.subi %23, %25 : vector<8x8xi32>
    %27 = arith.cmpi eq, %24, %26 : vector<8x8xi32>
    %28 = arith.extui %27 : vector<8x8xi1> to vector<8x8xi32>
    %29 = arith.sitofp %28 : vector<8x8xi32> to vector<8x8xf32>
    %c1_i32_17 = arith.constant 1 : i32
    %30 = vector.broadcast %c1_i32_17 : i32 to vector<8x8xi32>
    %31 = arith.addi %23, %30 : vector<8x8xi32>
    %32 = arith.cmpi eq, %24, %31 : vector<8x8xi32>
    %33 = arith.extui %32 : vector<8x8xi1> to vector<8x8xi32>
    %34 = arith.sitofp %33 : vector<8x8xi32> to vector<8x8xf32>
    %cst_18 = arith.constant dense<0.000000e+00> : vector<8x128xf32>
    %35 = tpu.matmul %29, %22, %cst_18 {dimension_numbers = #tpu.dot_dimension_numbers<[1], [0], [0], [1], [0, 0, 1, 1], [], []>} : vector<8x8xf32>, vector<8x128xf32>, vector<8x128xf32> -> vector<8x128xf32>
    %cst_19 = arith.constant dense<0.000000e+00> : vector<8x128xf32>
    %36 = tpu.matmul %34, %22, %cst_19 {dimension_numbers = #tpu.dot_dimension_numbers<[1], [0], [0], [1], [0, 0, 1, 1], [], []>} : vector<8x8xf32>, vector<8x128xf32>, vector<8x128xf32> -> vector<8x128xf32>
    %c0_20 = arith.constant 0 : index
    %c0_21 = arith.constant 0 : index
    %c0_22 = arith.constant 0 : index
    %37 = vector.load %arg5[%c0_20, %c0_21, %c0_22] : memref<3x128x128xf32, #tpu.memory_space<vmem>>, vector<1x128x128xf32>
    %38 = vector.shape_cast %37 : vector<1x128x128xf32> to vector<128x128xf32>
    %cst_23 = arith.constant dense<0.000000e+00> : vector<8x128xf32>
    %39 = tpu.matmul %35, %38, %cst_23 {dimension_numbers = #tpu.dot_dimension_numbers<[1], [0], [0], [1], [0, 0, 1, 1], [], []>} : vector<8x128xf32>, vector<128x128xf32>, vector<8x128xf32> -> vector<8x128xf32>
    %c1_24 = arith.constant 1 : index
    %c0_25 = arith.constant 0 : index
    %c0_26 = arith.constant 0 : index
    %40 = vector.load %arg5[%c1_24, %c0_25, %c0_26] : memref<3x128x128xf32, #tpu.memory_space<vmem>>, vector<1x128x128xf32>
    %41 = vector.shape_cast %40 : vector<1x128x128xf32> to vector<128x128xf32>
    %cst_27 = arith.constant dense<0.000000e+00> : vector<8x128xf32>
    %42 = tpu.matmul %22, %41, %cst_27 {dimension_numbers = #tpu.dot_dimension_numbers<[1], [0], [0], [1], [0, 0, 1, 1], [], []>} : vector<8x128xf32>, vector<128x128xf32>, vector<8x128xf32> -> vector<8x128xf32>
    %43 = arith.addf %39, %42 : vector<8x128xf32>
    %c2_28 = arith.constant 2 : index
    %c0_29 = arith.constant 0 : index
    %c0_30 = arith.constant 0 : index
    %44 = vector.load %arg5[%c2_28, %c0_29, %c0_30] : memref<3x128x128xf32, #tpu.memory_space<vmem>>, vector<1x128x128xf32>
    %45 = vector.shape_cast %44 : vector<1x128x128xf32> to vector<128x128xf32>
    %cst_31 = arith.constant dense<0.000000e+00> : vector<8x128xf32>
    %46 = tpu.matmul %36, %45, %cst_31 {dimension_numbers = #tpu.dot_dimension_numbers<[1], [0], [0], [1], [0, 0, 1, 1], [], []>} : vector<8x128xf32>, vector<128x128xf32>, vector<8x128xf32> -> vector<8x128xf32>
    %47 = arith.addf %43, %46 : vector<8x128xf32>
    %c0_32 = arith.constant 0 : index
    %c0_33 = arith.constant 0 : index
    %48 = vector.load %arg6[%c0_32, %c0_33] : memref<1x128xf32, #tpu.memory_space<vmem>>, vector<1x128xf32>
    %49 = vector.broadcast %48 : vector<1x128xf32> to vector<8x128xf32>
    %50 = arith.addf %47, %49 : vector<8x128xf32>
    %cst_34 = arith.constant 0.000000e+00 : f32
    %51 = vector.broadcast %cst_34 : f32 to vector<8x128xf32>
    %52 = arith.maximumf %50, %51 : vector<8x128xf32>
    %c0_35 = arith.constant 0 : index
    %c0_36 = arith.constant 0 : index
    %c0_37 = arith.constant 0 : index
    %53 = vector.load %arg7[%c0_35, %c0_36, %c0_37] : memref<1x8x128xf32, #tpu.memory_space<vmem>>, vector<1x8x128xf32>
    %54 = vector.shape_cast %53 : vector<1x8x128xf32> to vector<8x128xf32>
    %55 = vector.shape_cast %52 : vector<8x128xf32> to vector<1x8x128xf32>
    tpu.vector_store %arg7[%c0_35, %c0_36, %c0_37], %55 {strides = array<i32>} : memref<1x8x128xf32, #tpu.memory_space<vmem>>, vector<1x8x128xf32>,
    return
  }
  func.func @transform_0(%arg0: i32) -> (i32, i32, i32) {
    %c0_i32 = arith.constant 0 : i32
    %c0_i32_0 = arith.constant 0 : i32
    %c0_i32_1 = arith.constant 0 : i32
    return %arg0, %c0_i32, %c0_i32_0 : i32, i32, i32
  }
  func.func @transform_1(%arg0: i32) -> (i32, i32, i32) {
    %c0_i32 = arith.constant 0 : i32
    %c0_i32_0 = arith.constant 0 : i32
    %c0_i32_1 = arith.constant 0 : i32
    return %arg0, %c0_i32, %c0_i32_0 : i32, i32, i32
  }
  func.func @transform_2(%arg0: i32) -> (i32, i32, i32) {
    %c0_i32 = arith.constant 0 : i32
    %c0_i32_0 = arith.constant 0 : i32
    %c0_i32_1 = arith.constant 0 : i32
    %c0_i32_2 = arith.constant 0 : i32
    return %c0_i32, %c0_i32_0, %c0_i32_1 : i32, i32, i32
  }
  func.func @transform_3(%arg0: i32) -> (i32, i32) {
    %c0_i32 = arith.constant 0 : i32
    %c0_i32_0 = arith.constant 0 : i32
    %c0_i32_1 = arith.constant 0 : i32
    return %c0_i32, %c0_i32_0 : i32, i32
  }
  func.func @transform_4(%arg0: i32) -> (i32, i32, i32) {
    %c0_i32 = arith.constant 0 : i32
    %c0_i32_0 = arith.constant 0 : i32
    %c0_i32_1 = arith.constant 0 : i32
    %c0_i32_2 = arith.constant 0 : i32
    return %c0_i32, %c0_i32_0, %c0_i32_1 : i32, i32, i32
  }
  func.func @transform_5(%arg0: i32) -> (i32, i32) {
    %c0_i32 = arith.constant 0 : i32
    %c0_i32_0 = arith.constant 0 : i32
    %c0_i32_1 = arith.constant 0 : i32
    return %c0_i32, %c0_i32_0 : i32, i32
  }
  func.func @transform_6(%arg0: i32) -> (i32, i32, i32) {
    %c0_i32 = arith.constant 0 : i32
    %c0_i32_0 = arith.constant 0 : i32
    %c0_i32_1 = arith.constant 0 : i32
    return %arg0, %c0_i32, %c0_i32_0 : i32, i32, i32
  }
}

</mosaic_0001>

<llo_original>
// kernel: tile.18
$region0: #{tile.18}
  #allocation0 [shape = 's32[1]{0}', space=sflag, size = 0x4, scoped, tag = 'scoped memory for tile.18']
  %s0 = inlined_call_operand.vmem [shape: f32[8], index: 0, kind: input, shape index: {}]
  %s1 = inlined_call_operand.vmem [shape: f32[8,8], index: 1, kind: output, shape index: {}]
  // Predicated region
  $region2: #{tile.18} parent=0 // pred_check
    _
  $region3: #{tile.18} parent=0 // pred_check_branch
    %3 = sbr.rel (0) target = $region5
  $region4: #{tile.18} parent=0 // pred_region
    _
  $region5: #{tile.18} parent=0 // pred_fallthru
    _
  %v4 = vld [vmem:[%s0] ss:$0 sm:$0xff]
  %5 = vst [vmem:[%s1] sm:$0xff] %v4

// kernel: tile.19
$region0: #{tile.19}
  %s0 = inlined_call_operand.vmem [shape: f32[8,8], index: 0, kind: input, shape index: {}]
  %s1 = inlined_call_operand.vmem [shape: f32[1,64], index: 1, kind: output, shape index: {}]
  $region1: #{tile.19} parent=0
    #allocation0 [shape = 'u8[4096]{0}', space=vmem, size = 0x1000, scoped, tag = 'scoped mem for output reshape']
    %v2 = vld [vmem:[%s0] sm:$0x1]
    %vm3 = vcmask 64512
    %4 = vst.msk [vmem:[#allocation0] sm:$0x1] %vm3, %v2
    %s5 = scalar_lea.vmem %s0, 7
    %v6 = vld [vmem:[%s5] sm:$0x1]
    %7 = vrot.lane.b32.xlu0 %v6, 56
    %v8 = vpop.permute.xlu0 %7
    %vm9 = vcmask 523712
    %10 = vst.msk [vmem:[#allocation0] sm:$0x1] %vm9, %v8
    %s11 = scalar_lea.vmem %s0, 6
    %v12 = vld [vmem:[%s11] sm:$0x1]
    %13 = vrot.lane.b32.xlu0 %v12, 48
    %v14 = vpop.permute.xlu0 %13
    %vm15 = vcmask 458112
    %16 = vst.msk [vmem:[#allocation0] sm:$0x1] %vm15, %v14
    %s17 = scalar_lea.vmem %s0, 5
    %v18 = vld [vmem:[%s17] sm:$0x1]
    %19 = vrot.lane.b32.xlu0 %v18, 40
    %v20 = vpop.permute.xlu0 %19
    %vm21 = vcmask 392512
    %22 = vst.msk [vmem:[#allocation0] sm:$0x1] %vm21, %v20
    %s23 = scalar_lea.vmem %s0, 4
    %v24 = vld [vmem:[%s23] sm:$0x1]
    %25 = vrot.lane.b32.xlu0 %v24, 32
    %v26 = vpop.permute.xlu0 %25
    %vm27 = vcmask 326912
    %28 = vst.msk [vmem:[#allocation0] sm:$0x1] %vm27, %v26
    %s29 = scalar_lea.vmem %s0, 3
    %v30 = vld [vmem:[%s29] sm:$0x1]
    %31 = vrot.lane.b32.xlu0 %v30, 24
    %v32 = vpop.permute.xlu0 %31
    %vm33 = vcmask 261312
    %34 = vst.msk [vmem:[#allocation0] sm:$0x1] %vm33, %v32
    %s35 = scalar_lea.vmem %s0, 2
    %v36 = vld [vmem:[%s35] sm:$0x1]
    %37 = vrot.lane.b32.xlu0 %v36, 16
    %v38 = vpop.permute.xlu0 %37
    %vm39 = vcmask 195712
    %40 = vst.msk [vmem:[#allocation0] sm:$0x1] %vm39, %v38
    %s41 = scalar_lea.vmem %s0, 1
    %v42 = vld [vmem:[%s41] sm:$0x1]
    %43 = vrot.lane.b32.xlu0 %v42, 8
    %v44 = vpop.permute.xlu0 %43
    %vm45 = vcmask 130112
    %46 = vst.msk [vmem:[#allocation0] sm:$0x1] %vm45, %v44
    %s48 = sshllo.u32 0, 1
    %v50 = vld [vmem:[#allocation0] sm:%s48]
    %s51 = sshllo.u32 0, 1
    %52 = vst [vmem:[%s1] sm:%s51] %v50

// kernel: tile.13
$region0: #{tile.13}
  #allocation0 [shape = 's32[1]{0}', space=sflag, size = 0x4, scoped, tag = 'scoped memory for tile.13']
  %s0 = inlined_call_operand.vmem [shape: f32[4], index: 0, kind: input, shape index: {}]
  %s1 = inlined_call_operand.vmem [shape: f32[8,4], index: 1, kind: output, shape index: {}]
  // Predicated region
  $region2: #{tile.13} parent=0 // pred_check
    _
  $region3: #{tile.13} parent=0 // pred_check_branch
    %3 = sbr.rel (0) target = $region5
  $region4: #{tile.13} parent=0 // pred_region
    _
  $region5: #{tile.13} parent=0 // pred_fallthru
    _
  %v4 = vld [vmem:[%s0] ss:$0 sm:$0xff]
  %5 = vst [vmem:[%s1] sm:$0xff] %v4

// kernel: tile.14
$region0: #{tile.14}
  %s0 = inlined_call_operand.vmem [shape: f32[8,4], index: 0, kind: input, shape index: {}]
  %s1 = inlined_call_operand.vmem [shape: f32[1,32], index: 1, kind: output, shape index: {}]
  $region1: #{tile.14} parent=0
    #allocation0 [shape = 'u8[4096]{0}', space=vmem, size = 0x1000, scoped, tag = 'scoped mem for output reshape']
    %v2 = vld [vmem:[%s0] sm:$0x1]
    %vm3 = vcmask 31744
    %4 = vst.msk [vmem:[#allocation0] sm:$0x1] %vm3, %v2
    %s5 = scalar_lea.vmem %s0, 7
    %v6 = vld [vmem:[%s5] sm:$0x1]
    %7 = vrot.lane.b32.xlu0 %v6, 28
    %v8 = vpop.permute.xlu0 %7
    %vm9 = vcmask 261344
    %10 = vst.msk [vmem:[#allocation0] sm:$0x1] %vm9, %v8
    %s11 = scalar_lea.vmem %s0, 6
    %v12 = vld [vmem:[%s11] sm:$0x1]
    %13 = vrot.lane.b32.xlu0 %v12, 24
    %v14 = vpop.permute.xlu0 %13
    %vm15 = vcmask 228544
    %16 = vst.msk [vmem:[#allocation0] sm:$0x1] %vm15, %v14
    %s17 = scalar_lea.vmem %s0, 5
    %v18 = vld [vmem:[%s17] sm:$0x1]
    %19 = vrot.lane.b32.xlu0 %v18, 20
    %v20 = vpop.permute.xlu0 %19
    %vm21 = vcmask 195744
    %22 = vst.msk [vmem:[#allocation0] sm:$0x1] %vm21, %v20
    %s23 = scalar_lea.vmem %s0, 4
    %v24 = vld [vmem:[%s23] sm:$0x1]
    %25 = vrot.lane.b32.xlu0 %v24, 16
    %v26 = vpop.permute.xlu0 %25
    %vm27 = vcmask 162944
    %28 = vst.msk [vmem:[#allocation0] sm:$0x1] %vm27, %v26
    %s29 = scalar_lea.vmem %s0, 3
    %v30 = vld [vmem:[%s29] sm:$0x1]
    %31 = vrot.lane.b32.xlu0 %v30, 12
    %v32 = vpop.permute.xlu0 %31
    %vm33 = vcmask 130144
    %34 = vst.msk [vmem:[#allocation0] sm:$0x1] %vm33, %v32
    %s35 = scalar_lea.vmem %s0, 2
    %v36 = vld [vmem:[%s35] sm:$0x1]
    %37 = vrot.lane.b32.xlu0 %v36, 8
    %v38 = vpop.permute.xlu0 %37
    %vm39 = vcmask 97344
    %40 = vst.msk [vmem:[#allocation0] sm:$0x1] %vm39, %v38
    %s41 = scalar_lea.vmem %s0, 1
    %v42 = vld [vmem:[%s41] sm:$0x1]
    %43 = vrot.lane.b32.xlu0 %v42, 4
    %v44 = vpop.permute.xlu0 %43
    %vm45 = vcmask 64544
    %46 = vst.msk [vmem:[#allocation0] sm:$0x1] %vm45, %v44
    %s48 = sshllo.u32 0, 1
    %v50 = vld [vmem:[#allocation0] sm:%s48]
    %s51 = sshllo.u32 0, 1
    %52 = vst [vmem:[%s1] sm:%s51] %v50

// kernel: sepconv_forward.1
$region0: #{sepconv_forward.1}
  #allocation0 [shape = 'u32[]', space=smem, size = 0x4, offset = 0x4, fixed_abs, tag = 'smem constant byte address 0x4 - core index']
  #allocation1 [shape = 'u32[144,128]{1,0:T(1,128)}', space=vmem, size = 0x12000, scoped, tag = 'internal scratch']
  %s0 = inlined_call_operand.vmem [shape: f32[2,9,128], index: 0, kind: input, shape index: {}]
  %s1 = inlined_call_operand.vmem [shape: f32[2,9,128], index: 1, kind: input, shape index: {}]
  %s2 = inlined_call_operand.vmem [shape: f32[3,128,128], index: 2, kind: input, shape index: {}]
  %s3 = inlined_call_operand.vmem [shape: f32[1,128], index: 3, kind: input, shape index: {}]
  %s4 = inlined_call_operand.vmem [shape: f32[3,128,128], index: 4, kind: input, shape index: {}]
  %s5 = inlined_call_operand.vmem [shape: f32[1,128], index: 5, kind: input, shape index: {}]
  %s6 = inlined_call_operand.vmem [shape: f32[2,8,128], index: 6, kind: output, shape index: {}]
  %s7 = sld [smem:[#allocation0]]
  $region57: #{sepconv_forward.1} parent=0
    _
  %s9 = ssub.s32 1, %s7
  %s10 = scalar_select 0, %s9, %s7
  loop: start=0, step=1, limit=4
  $region2: #{sepconv_forward.1} parent=0 // loop_pre_header
    _
  $region3: #{sepconv_forward.1} parent=0 // loop_header
    %s12 = sphi 0, %s16
    %p13 = scmp.ge.s32.totalorder %s12, 4
    %s22 = sphi 0, %s24
    %s25 = sphi 0, %s22
    %s26 = sphi 0, %s25
    %s42 = sphi 0, %s26
    %s48 = sphi 0, %s50
    %s51 = sphi 0, %s48
    %s52 = sphi 0, %s51
    %s68 = sphi 0, %s52
    %s72 = sphi 0, %s72
    %s74 = sphi 0, %s72
    %s75 = sphi 0, %s74
    %s89 = sphi 0, %s75
    %s93 = sphi 0, %s93
    %s95 = sphi 0, %s93
    %s96 = sphi 0, %s95
    %s110 = sphi 0, %s96
    %s114 = sphi 0, %s114
    %s116 = sphi 0, %s114
    %s117 = sphi 0, %s116
    %s131 = sphi 0, %s117
    %s135 = sphi 0, %s135
    %s137 = sphi 0, %s135
    %s138 = sphi 0, %s137
    %s152 = sphi 0, %s138
    %s158 = sphi 0, %s160
    %s161 = sphi 0, %s158
    %s162 = sphi 0, %s161
    %s178 = sphi 0, %s162
  $region4: #{sepconv_forward.1} parent=0 // loop_header_branch
    %15 = sbr.rel (%p13) target = $region8
  $region5: #{sepconv_forward.1} parent=0 // loop_body
    %s17 = ssub.s32 %s12, 1
    %s18 = ssub.s32 %s12, 2
    %s19 = sadd.s32 %s12, 1
    %s20 = ssub.s32 %s12, %s19
    %p21 = scmp.eq.s32.totalorder %s20, 0
    %s23 = sadd.s32 %s22, 1
    %s24 = scalar_select %p21, %s22, %s23
    %p27 = pneg %p21
    %p28 = scmp.eq.s32.totalorder %s12, 1
    %p29 = por %p27, %p28
    %p30 = scmp.ne.s32.totalorder %s22, %s25
    %p31 = scmp.eq.s32.totalorder %s12, 0
    %p32 = por %p30, %p31
    %p33 = scmp.ne.s32.totalorder %s22, %s25
    %p34 = scmp.eq.s32.totalorder %s17, 1
    %p35 = por %p33, %p34
    %p36 = scmp.ne.s32.totalorder %s25, %s26
    %p37 = scmp.eq.s32.totalorder %s17, 0
    %p38 = por %p36, %p37
    %p39 = scmp.ne.s32.totalorder %s25, %s26
    %p40 = scmp.eq.s32.totalorder %s18, 1
    %p41 = por %p39, %p40
    %p43 = scmp.ne.s32.totalorder %s26, %s42
    %p44 = scmp.eq.s32.totalorder %s18, 0
    %p45 = por %p43, %p44
    %s46 = ssub.s32 %s12, %s19
    %p47 = scmp.eq.s32.totalorder %s46, 0
    %s49 = sadd.s32 %s48, 1
    %s50 = scalar_select %p47, %s48, %s49
    %p53 = pneg %p47
    %p54 = scmp.eq.s32.totalorder %s12, 1
    %p55 = por %p53, %p54
    %p56 = scmp.ne.s32.totalorder %s48, %s51
    %p57 = scmp.eq.s32.totalorder %s12, 0
    %p58 = por %p56, %p57
    %p59 = scmp.ne.s32.totalorder %s48, %s51
    %p60 = scmp.eq.s32.totalorder %s17, 1
    %p61 = por %p59, %p60
    %p62 = scmp.ne.s32.totalorder %s51, %s52
    %p63 = scmp.eq.s32.totalorder %s17, 0
    %p64 = por %p62, %p63
    %p65 = scmp.ne.s32.totalorder %s51, %s52
    %p66 = scmp.eq.s32.totalorder %s18, 1
    %p67 = por %p65, %p66
    %p69 = scmp.ne.s32.totalorder %s52, %s68
    %p70 = scmp.eq.s32.totalorder %s18, 0
    %p71 = por %p69, %p70
    %s73 = sadd.s32 %s72, 1
    %p76 = scmp.eq.s32.totalorder %s12, 1
    %p77 = scmp.ne.s32.totalorder %s72, %s74
    %p78 = scmp.eq.s32.totalorder %s12, 0
    %p79 = por %p77, %p78
    %p80 = scmp.ne.s32.totalorder %s72, %s74
    %p81 = scmp.eq.s32.totalorder %s17, 1
    %p82 = por %p80, %p81
    %p83 = scmp.ne.s32.totalorder %s74, %s75
    %p84 = scmp.eq.s32.totalorder %s17, 0
    %p85 = por %p83, %p84
    %p86 = scmp.ne.s32.totalorder %s74, %s75
    %p87 = scmp.eq.s32.totalorder %s18, 1
    %p88 = por %p86, %p87
    %p90 = scmp.ne.s32.totalorder %s75, %s89
    %p91 = scmp.eq.s32.totalorder %s18, 0
    %p92 = por %p90, %p91
    %s94 = sadd.s32 %s93, 1
    %p97 = scmp.eq.s32.totalorder %s12, 1
    %p98 = scmp.ne.s32.totalorder %s93, %s95
    %p99 = scmp.eq.s32.totalorder %s12, 0
    %p100 = por %p98, %p99
    %p101 = scmp.ne.s32.totalorder %s93, %s95
    %p102 = scmp.eq.s32.totalorder %s17, 1
    %p103 = por %p101, %p102
    %p104 = scmp.ne.s32.totalorder %s95, %s96
    %p105 = scmp.eq.s32.totalorder %s17, 0
    %p106 = por %p104, %p105
    %p107 = scmp.ne.s32.totalorder %s95, %s96
    %p108 = scmp.eq.s32.totalorder %s18, 1
    %p109 = por %p107, %p108
    %p111 = scmp.ne.s32.totalorder %s96, %s110
    %p112 = scmp.eq.s32.totalorder %s18, 0
    %p113 = por %p111, %p112
    %s115 = sadd.s32 %s114, 1
    %p118 = scmp.eq.s32.totalorder %s12, 1
    %p119 = scmp.ne.s32.totalorder %s114, %s116
    %p120 = scmp.eq.s32.totalorder %s12, 0
    %p121 = por %p119, %p120
    %p122 = scmp.ne.s32.totalorder %s114, %s116
    %p123 = scmp.eq.s32.totalorder %s17, 1
    %p124 = por %p122, %p123
    %p125 = scmp.ne.s32.totalorder %s116, %s117
    %p126 = scmp.eq.s32.totalorder %s17, 0
    %p127 = por %p125, %p126
    %p128 = scmp.ne.s32.totalorder %s116, %s117
    %p129 = scmp.eq.s32.totalorder %s18, 1
    %p130 = por %p128, %p129
    %p132 = scmp.ne.s32.totalorder %s117, %s131
    %p133 = scmp.eq.s32.totalorder %s18, 0
    %p134 = por %p132, %p133
    %s136 = sadd.s32 %s135, 1
    %p139 = scmp.eq.s32.totalorder %s12, 1
    %p140 = scmp.ne.s32.totalorder %s135, %s137
    %p141 = scmp.eq.s32.totalorder %s12, 0
    %p142 = por %p140, %p141
    %p143 = scmp.ne.s32.totalorder %s135, %s137
    %p144 = scmp.eq.s32.totalorder %s17, 1
    %p145 = por %p143, %p144
    %p146 = scmp.ne.s32.totalorder %s137, %s138
    %p147 = scmp.eq.s32.totalorder %s17, 0
    %p148 = por %p146, %p147
    %p149 = scmp.ne.s32.totalorder %s137, %s138
    %p150 = scmp.eq.s32.totalorder %s18, 1
    %p151 = por %p149, %p150
    %p153 = scmp.ne.s32.totalorder %s138, %s152
    %p154 = scmp.eq.s32.totalorder %s18, 0
    %p155 = por %p153, %p154
    %s156 = ssub.s32 %s12, %s19
    %p157 = scmp.eq.s32.totalorder %s156, 0
    %s159 = sadd.s32 %s158, 1
    %s160 = scalar_select %p157, %s158, %s159
    %p163 = pneg %p157
    %p164 = scmp.eq.s32.totalorder %s12, 1
    %p165 = por %p163, %p164
    %p166 = scmp.ne.s32.totalorder %s158, %s161
    %p167 = scmp.eq.s32.totalorder %s12, 0
    %p168 = por %p166, %p167
    %p169 = scmp.ne.s32.totalorder %s158, %s161
    %p170 = scmp.eq.s32.totalorder %s17, 1
    %p171 = por %p169, %p170
    %p172 = scmp.ne.s32.totalorder %s161, %s162
    %p173 = scmp.eq.s32.totalorder %s17, 0
    %p174 = por %p172, %p173
    %p175 = scmp.ne.s32.totalorder %s161, %s162
    %p176 = scmp.eq.s32.totalorder %s18, 1
    %p177 = por %p175, %p176
    %p179 = scmp.ne.s32.totalorder %s162, %s178
    %p180 = scmp.eq.s32.totalorder %s18, 0
    %p181 = por %p179, %p180
    %p182 = scmp.le.s32.totalorder 1, %s12
    %p183 = scmp.lt.s32.totalorder %s12, 3
    %p184 = pnand %p182, %p183
    %p185 = pneg %p184
    // Predicated region
    $region9: #{sepconv_forward.1} parent=5 // pred_check
      _
    $region10: #{sepconv_forward.1} parent=5 // pred_check_branch
      %187 = sbr.rel (%p184) target = $region12
    $region11: #{sepconv_forward.1} parent=5 // pred_region
      %s188 = ssub.s32 %s12, 1
      // Predicated region
      $region13: #{sepconv_forward.1} parent=11 // pred_check
        %p189 = pneg %p85
      $region14: #{sepconv_forward.1} parent=11 // pred_check_branch
        %191 = sbr.rel (%p189) target = $region16
      $region15: #{sepconv_forward.1} parent=11 // pred_region
        _
      $region16: #{sepconv_forward.1} parent=11 // pred_fallthru
        _
      // Predicated region
      $region17: #{sepconv_forward.1} parent=11 // pred_check
        %p192 = pneg %p106
      $region18: #{sepconv_forward.1} parent=11 // pred_check_branch
        %194 = sbr.rel (%p192) target = $region20
      $region19: #{sepconv_forward.1} parent=11 // pred_region
        _
      $region20: #{sepconv_forward.1} parent=11 // pred_fallthru
        _
      // Predicated region
      $region21: #{sepconv_forward.1} parent=11 // pred_check
        %p195 = pneg %p127
      $region22: #{sepconv_forward.1} parent=11 // pred_check_branch
        %197 = sbr.rel (%p195) target = $region24
      $region23: #{sepconv_forward.1} parent=11 // pred_region
        _
      $region24: #{sepconv_forward.1} parent=11 // pred_fallthru
        _
      // Predicated region
      $region25: #{sepconv_forward.1} parent=11 // pred_check
        %p198 = pneg %p148
      $region26: #{sepconv_forward.1} parent=11 // pred_check_branch
        %200 = sbr.rel (%p198) target = $region28
      $region27: #{sepconv_forward.1} parent=11 // pred_region
        _
      $region28: #{sepconv_forward.1} parent=11 // pred_fallthru
        _
    $region12: #{sepconv_forward.1} parent=5 // pred_fallthru
      _
    %p201 = scmp.lt.s32.totalorder %s12, 2
    // Predicated region
    $region29: #{sepconv_forward.1} parent=5 // pred_check
      %p202 = pneg %p201
    $region30: #{sepconv_forward.1} parent=5 // pred_check_branch
      %204 = sbr.rel (%p202) target = $region32
    $region31: #{sepconv_forward.1} parent=5 // pred_region
      // Predicated region
      $region33: #{sepconv_forward.1} parent=31 // pred_check
        %p205 = pneg %p32
      $region34: #{sepconv_forward.1} parent=31 // pred_check_branch
        %207 = sbr.rel (%p205) target = $region36
      $region35: #{sepconv_forward.1} parent=31 // pred_region
        %p208 = scmp.lt.s32.totalorder %s12, 1
        %s209 = scalar_select %p208, %s12, 1
        %s210 = smul.addr %s209, 2
        %s211 = smul.addr %s210, 8
        %s212 = scalar_lea.vmem %s0, %s211
      $region36: #{sepconv_forward.1} parent=31 // pred_fallthru
        _
      // Predicated region
      $region37: #{sepconv_forward.1} parent=31 // pred_check
        %p213 = pneg %p58
      $region38: #{sepconv_forward.1} parent=31 // pred_check_branch
        %215 = sbr.rel (%p213) target = $region40
      $region39: #{sepconv_forward.1} parent=31 // pred_region
        %p216 = scmp.lt.s32.totalorder %s12, 1
        %s217 = scalar_select %p216, %s12, 1
        %s218 = smul.addr %s217, 2
        %s219 = smul.addr %s218, 8
        %s220 = scalar_lea.vmem %s1, %s219
      $region40: #{sepconv_forward.1} parent=31 // pred_fallthru
        _
    $region32: #{sepconv_forward.1} parent=5 // pred_fallthru
      _
    %p221 = scmp.le.s32.totalorder 1, %s12
    %p222 = scmp.lt.s32.totalorder %s12, 3
    %p223 = pnand %p221, %p222
    %p224 = pneg %p223
    // Predicated region
    $region41: #{sepconv_forward.1} parent=5 // pred_check
      _
    $region42: #{sepconv_forward.1} parent=5 // pred_check_branch
      %226 = sbr.rel (%p223) target = $region44
    $region43: #{sepconv_forward.1} parent=5 // pred_region
      %s227 = ssub.s32 %s12, 1
      %p228 = scmp.lt.s32.totalorder %s17, 1
      %s229 = scalar_select %p228, %s17, 1
      %s230 = smul.addr %s229, 2
      %s231 = smul.addr %s230, 8
      %s232 = scalar_lea.vmem %s0, %s231
      %p233 = pneg %p38
      %p234 = pneg %p35
      %p235 = scmp.lt.s32.totalorder %s17, 1
      %s236 = scalar_select %p235, %s17, 1
      %s237 = smul.addr %s236, 2
      %s238 = smul.addr %s237, 8
      %s239 = scalar_lea.vmem %s1, %s238
      %p240 = pneg %p64
      %p241 = pneg %p61
      %p242 = pneg %p85
      %p243 = pneg %p82
      %p244 = pneg %p106
      %p245 = pneg %p103
      %p246 = pneg %p127
      %p247 = pneg %p124
      %p248 = pneg %p148
      %p249 = pneg %p145
      %p250 = pneg %p174
      %p251 = pneg %p171
      %p252 = scmp.lt.s32.totalorder %s17, 1
      %s253 = scalar_select %p252, %s17, 1
      %s254 = smul.addr %s253, 8
      %s255 = scalar_lea.vmem %s6, %s254
      %p256 = scmp.lt.s32.totalorder %s17, 1
      %s257 = scalar_select %p256, %s17, 1
      %s258 = smul.addr %s257, 2
      %s259 = smul.addr %s258, 8
      %s260 = scalar_lea.vmem %s0, %s259
      %p261 = scmp.lt.s32.totalorder %s17, 1
      %s262 = scalar_select %p261, %s17, 1
      %s263 = smul.addr %s262, 2
      %s264 = smul.addr %s263, 8
      %s265 = scalar_lea.vmem %s1, %s264
      %p266 = scmp.lt.s32.totalorder %s17, 1
      %s267 = scalar_select %p266, %s17, 1
      %s268 = smul.addr %s267, 8
      %s269 = scalar_lea.vmem %s6, %s268
      %v270 = vld [vmem:[%s260] sm:$0xff]
      %v271 = vld [vmem:[%s260 + $0x8] sm:$0x1]
      %v272 = vld [vmem:[%s265] sm:$0xff]
      %v273 = vld [vmem:[%s2] sm:$0xff]
      %v274 = vld [vmem:[%s2 + $0x8] sm:$0xff]
      %v275 = vld [vmem:[%s2 + $0x10] sm:$0xff]
      %v276 = vld [vmem:[%s2 + $0x18] sm:$0xff]
      %v277 = vld [vmem:[%s2 + $0x20] sm:$0xff]
      %v278 = vld [vmem:[%s2 + $0x28] sm:$0xff]
      %v279 = vld [vmem:[%s2 + $0x30] sm:$0xff]
      %v280 = vld [vmem:[%s2 + $0x38] sm:$0xff]
      %v281 = vld [vmem:[%s2 + $0x40] sm:$0xff]
      %v282 = vld [vmem:[%s2 + $0x48] sm:$0xff]
      %v283 = vld [vmem:[%s2 + $0x50] sm:$0xff]
      %v284 = vld [vmem:[%s2 + $0x58] sm:$0xff]
      %v285 = vld [vmem:[%s2 + $0x60] sm:$0xff]
      %v286 = vld [vmem:[%s2 + $0x68] sm:$0xff]
      %v287 = vld [vmem:[%s2 + $0x70] sm:$0xff]
      %v288 = vld [vmem:[%s2 + $0x78] sm:$0xff]
      %s289 = scalar_lea.vmem %s2, 128
      %v290 = vld [vmem:[%s289] sm:$0xff]
      %v291 = vld [vmem:[%s289 + $0x8] sm:$0xff]
      %v292 = vld [vmem:[%s289 + $0x10] sm:$0xff]
      %v293 = vld [vmem:[%s289 + $0x18] sm:$0xff]
      %v294 = vld [vmem:[%s289 + $0x20] sm:$0xff]
      %v295 = vld [vmem:[%s289 + $0x28] sm:$0xff]
      %v296 = vld [vmem:[%s289 + $0x30] sm:$0xff]
      %v297 = vld [vmem:[%s289 + $0x38] sm:$0xff]
      %v298 = vld [vmem:[%s289 + $0x40] sm:$0xff]
      %v299 = vld [vmem:[%s289 + $0x48] sm:$0xff]
      %v300 = vld [vmem:[%s289 + $0x50] sm:$0xff]
      %v301 = vld [vmem:[%s289 + $0x58] sm:$0xff]
      %v302 = vld [vmem:[%s289 + $0x60] sm:$0xff]
      %v303 = vld [vmem:[%s289 + $0x68] sm:$0xff]
      %v304 = vld [vmem:[%s289 + $0x70] sm:$0xff]
      %v305 = vld [vmem:[%s289 + $0x78] sm:$0xff]
      %306 = vmatprep.subr.mxu0 0.0
      %307 = vmatpush1.msra.mxu0 %v290
      %308 = vmatprep.subr.mxu0 0.0
      %309 = vmatpush1.msra.mxu0 %v291
      %310 = vmatprep.subr.mxu0 0.0
      %311 = vmatpush1.msra.mxu0 %v292
      %312 = vmatprep.subr.mxu0 0.0
      %313 = vmatpush1.msra.mxu0 %v293
      %314 = vmatprep.subr.mxu0 0.0
      %315 = vmatpush1.msra.mxu0 %v294
      %316 = vmatprep.subr.mxu0 0.0
      %317 = vmatpush1.msra.mxu0 %v295
      %318 = vmatprep.subr.mxu0 0.0
      %319 = vmatpush1.msra.mxu0 %v296
      %320 = vmatprep.subr.mxu0 0.0
      %321 = vmatpush1.msra.mxu0 %v297
      %322 = vmatprep.subr.mxu0 0.0
      %323 = vmatpush1.msra.mxu0 %v298
      %324 = vmatprep.subr.mxu0 0.0
      %325 = vmatpush1.msra.mxu0 %v299
      %326 = vmatprep.subr.mxu0 0.0
      %327 = vmatpush1.msra.mxu0 %v300
      %328 = vmatprep.subr.mxu0 0.0
      %329 = vmatpush1.msra.mxu0 %v301
      %330 = vmatprep.subr.mxu0 0.0
      %331 = vmatpush1.msra.mxu0 %v302
      %332 = vmatprep.subr.mxu0 0.0
      %333 = vmatpush1.msra.mxu0 %v303
      %334 = vmatprep.subr.mxu0 0.0
      %335 = vmatpush1.msra.mxu0 %v304
      %336 = vmatprep.subr.mxu0 0.0
      %337 = vmatpush1.msra.mxu0 %v305
      %338 = vmatprep.subr.mxu0 0.0
      %339 = vmatpush1.msra.mxu0 0.0
      %340 = vmatprep.subr.mxu0 0.0
      %341 = vmatpush1.msra.mxu0 0.0
      %342 = vmatprep.subr.mxu0 0.0
      %343 = vmatpush1.msra.mxu0 0.0
      %344 = vmatprep.subr.mxu0 0.0
      %345 = vmatpush1.msra.mxu0 0.0
      %346 = vmatprep.subr.mxu0 0.0
      %347 = vmatpush1.msra.mxu0 0.0
      %348 = vmatprep.subr.mxu0 0.0
      %349 = vmatpush1.msra.mxu0 0.0
      %350 = vmatprep.subr.mxu0 0.0
      %351 = vmatpush1.msra.mxu0 0.0
      %352 = vmatprep.subr.mxu0 0.0
      %353 = vmatpush1.msra.mxu0 0.0
      %354 = vmatprep.subr.mxu0 0.0
      %355 = vmatpush1.msra.mxu0 0.0
      %356 = vmatprep.subr.mxu0 0.0
      %357 = vmatpush1.msra.mxu0 0.0
      %358 = vmatprep.subr.mxu0 0.0
      %359 = vmatpush1.msra.mxu0 0.0
      %360 = vmatprep.subr.mxu0 0.0
      %361 = vmatpush1.msra.mxu0 0.0
      %362 = vmatprep.subr.mxu0 0.0
      %363 = vmatpush1.msra.mxu0 0.0
      %364 = vmatprep.subr.mxu0 0.0
      %365 = vmatpush1.msra.mxu0 0.0
      %366 = vmatprep.subr.mxu0 0.0
      %367 = vmatpush1.msra.mxu0 0.0
      %368 = vmatprep.subr.mxu0 0.0
      %369 = vmatpush1.msra.mxu0 0.0
      %370 = vmatprep.mubr.f32.mxu0 0.0
      %371 = vmatmul.mubr.f32.gmra.mrb[0].mxu0 %v272
      %v372 = vpop.f32.mrb[0].mxu0
      %v373 = vadd.f32 0.0, %v372
      %v374 = vpop.f32.mrb[0].mxu0
      %375 = vdwg.mxu0
      %376 = vmatprep.subr.mxu0 0.0
      %377 = vmatpush1.msra.mxu0 %v273
      %378 = vmatprep.subr.mxu0 0.0
      %379 = vmatpush1.msra.mxu0 %v274
      %380 = vmatprep.subr.mxu0 0.0
      %381 = vmatpush1.msra.mxu0 %v275
      %382 = vmatprep.subr.mxu0 0.0
      %383 = vmatpush1.msra.mxu0 %v276
      %384 = vmatprep.subr.mxu0 0.0
      %385 = vmatpush1.msra.mxu0 %v277
      %386 = vmatprep.subr.mxu0 0.0
      %387 = vmatpush1.msra.mxu0 %v278
      %388 = vmatprep.subr.mxu0 0.0
      %389 = vmatpush1.msra.mxu0 %v279
      %390 = vmatprep.subr.mxu0 0.0
      %391 = vmatpush1.msra.mxu0 %v280
      %392 = vmatprep.subr.mxu0 0.0
      %393 = vmatpush1.msra.mxu0 %v281
      %394 = vmatprep.subr.mxu0 0.0
      %395 = vmatpush1.msra.mxu0 %v282
      %396 = vmatprep.subr.mxu0 0.0
      %397 = vmatpush1.msra.mxu0 %v283
      %398 = vmatprep.subr.mxu0 0.0
      %399 = vmatpush1.msra.mxu0 %v284
      %400 = vmatprep.subr.mxu0 0.0
      %401 = vmatpush1.msra.mxu0 %v285
      %402 = vmatprep.subr.mxu0 0.0
      %403 = vmatpush1.msra.mxu0 %v286
      %404 = vmatprep.subr.mxu0 0.0
      %405 = vmatpush1.msra.mxu0 %v287
      %406 = vmatprep.subr.mxu0 0.0
      %407 = vmatpush1.msra.mxu0 %v288
      %408 = vmatprep.subr.mxu0 0.0
      %409 = vmatpush1.msra.mxu0 0.0
      %410 = vmatprep.subr.mxu0 0.0
      %411 = vmatpush1.msra.mxu0 0.0
      %412 = vmatprep.subr.mxu0 0.0
      %413 = vmatpush1.msra.mxu0 0.0
      %414 = vmatprep.subr.mxu0 0.0
      %415 = vmatpush1.msra.mxu0 0.0
      %416 = vmatprep.subr.mxu0 0.0
      %417 = vmatpush1.msra.mxu0 0.0
      %418 = vmatprep.subr.mxu0 0.0
      %419 = vmatpush1.msra.mxu0 0.0
      %420 = vmatprep.subr.mxu0 0.0
      %421 = vmatpush1.msra.mxu0 0.0
      %422 = vmatprep.subr.mxu0 0.0
      %423 = vmatpush1.msra.mxu0 0.0
      %424 = vmatprep.subr.mxu0 0.0
      %425 = vmatpush1.msra.mxu0 0.0
      %426 = vmatprep.subr.mxu0 0.0
      %427 = vmatpush1.msra.mxu0 0.0
      %428 = vmatprep.subr.mxu0 0.0
      %429 = vmatpush1.msra.mxu0 0.0
      %430 = vmatprep.subr.mxu0 0.0
      %431 = vmatpush1.msra.mxu0 0.0
      %432 = vmatprep.subr.mxu0 0.0
      %433 = vmatpush1.msra.mxu0 0.0
      %434 = vmatprep.subr.mxu0 0.0
      %435 = vmatpush1.msra.mxu0 0.0
      %436 = vmatprep.subr.mxu0 0.0
      %437 = vmatpush1.msra.mxu0 0.0
      %438 = vmatprep.subr.mxu0 0.0
      %439 = vmatpush1.msra.mxu0 0.0
      %440 = vmatprep.mubr.f32.mxu0 0.0
      %441 = vmatmul.mubr.f32.gmra.mrb[0].mxu0 %v270
      %v442 = vpop.f32.mrb[0].mxu0
      %v443 = vadd.f32 %v373, %v442
      %v444 = vpop.f32.mrb[0].mxu0
      %445 = vdwg.mxu0
      %s446 = scalar_lea.vmem %s2, 256
      %v447 = vld [vmem:[%s446] sm:$0xff]
      %v448 = vld [vmem:[%s446 + $0x8] sm:$0xff]
      %v449 = vld [vmem:[%s446 + $0x10] sm:$0xff]
      %v450 = vld [vmem:[%s446 + $0x18] sm:$0xff]
      %v451 = vld [vmem:[%s446 + $0x20] sm:$0xff]
      %v452 = vld [vmem:[%s446 + $0x28] sm:$0xff]
      %v453 = vld [vmem:[%s446 + $0x30] sm:$0xff]
      %v454 = vld [vmem:[%s446 + $0x38] sm:$0xff]
      %v455 = vld [vmem:[%s446 + $0x40] sm:$0xff]
      %v456 = vld [vmem:[%s446 + $0x48] sm:$0xff]
      %v457 = vld [vmem:[%s446 + $0x50] sm:$0xff]
      %v458 = vld [vmem:[%s446 + $0x58] sm:$0xff]
      %v459 = vld [vmem:[%s446 + $0x60] sm:$0xff]
      %v460 = vld [vmem:[%s446 + $0x68] sm:$0xff]
      %v461 = vld [vmem:[%s446 + $0x70] sm:$0xff]
      %v462 = vld [vmem:[%s446 + $0x78] sm:$0xff]
      %vm465 = vcmask 1046528
      %v466 = vrot.slane %v270, 1
      %v467 = vrot.slane %v271, 1
      %v468 = vsel %vm465, %v466, %v467
      %470 = vmatprep.subr.mxu0 0.0
      %471 = vmatpush1.msra.mxu0 %v447
      %472 = vmatprep.subr.mxu0 0.0
      %473 = vmatpush1.msra.mxu0 %v448
      %474 = vmatprep.subr.mxu0 0.0
      %475 = vmatpush1.msra.mxu0 %v449
      %476 = vmatprep.subr.mxu0 0.0
      %477 = vmatpush1.msra.mxu0 %v450
      %478 = vmatprep.subr.mxu0 0.0
      %479 = vmatpush1.msra.mxu0 %v451
      %480 = vmatprep.subr.mxu0 0.0
      %481 = vmatpush1.msra.mxu0 %v452
      %482 = vmatprep.subr.mxu0 0.0
      %483 = vmatpush1.msra.mxu0 %v453
      %484 = vmatprep.subr.mxu0 0.0
      %485 = vmatpush1.msra.mxu0 %v454
      %486 = vmatprep.subr.mxu0 0.0
      %487 = vmatpush1.msra.mxu0 %v455
      %488 = vmatprep.subr.mxu0 0.0
      %489 = vmatpush1.msra.mxu0 %v456
      %490 = vmatprep.subr.mxu0 0.0
      %491 = vmatpush1.msra.mxu0 %v457
      %492 = vmatprep.subr.mxu0 0.0
      %493 = vmatpush1.msra.mxu0 %v458
      %494 = vmatprep.subr.mxu0 0.0
      %495 = vmatpush1.msra.mxu0 %v459
      %496 = vmatprep.subr.mxu0 0.0
      %497 = vmatpush1.msra.mxu0 %v460
      %498 = vmatprep.subr.mxu0 0.0
      %499 = vmatpush1.msra.mxu0 %v461
      %500 = vmatprep.subr.mxu0 0.0
      %501 = vmatpush1.msra.mxu0 %v462
      %502 = vmatprep.subr.mxu0 0.0
      %503 = vmatpush1.msra.mxu0 0.0
      %504 = vmatprep.subr.mxu0 0.0
      %505 = vmatpush1.msra.mxu0 0.0
      %506 = vmatprep.subr.mxu0 0.0
      %507 = vmatpush1.msra.mxu0 0.0
      %508 = vmatprep.subr.mxu0 0.0
      %509 = vmatpush1.msra.mxu0 0.0
      %510 = vmatprep.subr.mxu0 0.0
      %511 = vmatpush1.msra.mxu0 0.0
      %512 = vmatprep.subr.mxu0 0.0
      %513 = vmatpush1.msra.mxu0 0.0
      %514 = vmatprep.subr.mxu0 0.0
      %515 = vmatpush1.msra.mxu0 0.0
      %516 = vmatprep.subr.mxu0 0.0
      %517 = vmatpush1.msra.mxu0 0.0
      %518 = vmatprep.subr.mxu0 0.0
      %519 = vmatpush1.msra.mxu0 0.0
      %520 = vmatprep.subr.mxu0 0.0
      %521 = vmatpush1.msra.mxu0 0.0
      %522 = vmatprep.subr.mxu0 0.0
      %523 = vmatpush1.msra.mxu0 0.0
      %524 = vmatprep.subr.mxu0 0.0
      %525 = vmatpush1.msra.mxu0 0.0
      %526 = vmatprep.subr.mxu0 0.0
      %527 = vmatpush1.msra.mxu0 0.0
      %528 = vmatprep.subr.mxu0 0.0
      %529 = vmatpush1.msra.mxu0 0.0
      %530 = vmatprep.subr.mxu0 0.0
      %531 = vmatpush1.msra.mxu0 0.0
      %532 = vmatprep.subr.mxu0 0.0
      %533 = vmatpush1.msra.mxu0 0.0
      %534 = vmatprep.mubr.f32.mxu0 0.0
      %535 = vmatmul.mubr.f32.gmra.mrb[0].mxu0 %v468
      %v536 = vpop.f32.mrb[0].mxu0
      %v537 = vadd.f32 0.0, %v536
      %v538 = vpop.f32.mrb[0].mxu0
      %539 = vdwg.mxu0
      %v540 = vadd.f32 %v443, %v537
      %v541 = vld [vmem:[%s3] sm:$0x1]
      %v543 = vlaneseq
      %v544 = vshrl.u32 %v543, 7
      %v545 = vsub.s32 0, %v544
      %v546 = vrot.slane %v541, %v545
      %v548 = vadd.f32 %v540, %v546
      %v549 = vmax.f32 %v548, 0.0
      %v550 = vlaneseq
      %v551 = vshrl.u32 %v550, 7
      %v552 = vlaneseq
      %v553 = vand.u32 %v552, 127
      %v554 = vsub.s32 %v551, 1
      %vm555 = vcmp.eq.s32.totalorder %v553, %v554
      %v556 = vsel %vm555, 1, 0
      %v557 = vcvt.s32.f32 %v556
      %v558 = vadd.s32 %v551, 1
      %vm559 = vcmp.eq.s32.totalorder %v553, %v558
      %v560 = vsel %vm559, 1, 0
      %v561 = vcvt.s32.f32 %v560
      %vm562 = vcmask 64512
      %v564 = vsel %vm562, %v557, 0
      %566 = vmatprep.subr.mxu0 0.0
      %567 = vmatpush1.msra.mxu0 %v549
      %568 = vmatprep.subr.mxu0 0.0
      %569 = vmatpush1.msra.mxu0 0.0
      %570 = vmatprep.subr.mxu0 0.0
      %571 = vmatpush1.msra.mxu0 0.0
      %572 = vmatprep.subr.mxu0 0.0
      %573 = vmatpush1.msra.mxu0 0.0
      %574 = vmatprep.subr.mxu0 0.0
      %575 = vmatpush1.msra.mxu0 0.0
      %576 = vmatprep.subr.mxu0 0.0
      %577 = vmatpush1.msra.mxu0 0.0
      %578 = vmatprep.subr.mxu0 0.0
      %579 = vmatpush1.msra.mxu0 0.0
      %580 = vmatprep.subr.mxu0 0.0
      %581 = vmatpush1.msra.mxu0 0.0
      %582 = vmatprep.subr.mxu0 0.0
      %583 = vmatpush1.msra.mxu0 0.0
      %584 = vmatprep.subr.mxu0 0.0
      %585 = vmatpush1.msra.mxu0 0.0
      %586 = vmatprep.subr.mxu0 0.0
      %587 = vmatpush1.msra.mxu0 0.0
      %588 = vmatprep.subr.mxu0 0.0
      %589 = vmatpush1.msra.mxu0 0.0
      %590 = vmatprep.subr.mxu0 0.0
      %591 = vmatpush1.msra.mxu0 0.0
      %592 = vmatprep.subr.mxu0 0.0
      %593 = vmatpush1.msra.mxu0 0.0
      %594 = vmatprep.subr.mxu0 0.0
      %595 = vmatpush1.msra.mxu0 0.0
      %596 = vmatprep.subr.mxu0 0.0
      %597 = vmatpush1.msra.mxu0 0.0
      %598 = vmatprep.subr.mxu0 0.0
      %599 = vmatpush1.msra.mxu0 0.0
      %600 = vmatprep.subr.mxu0 0.0
      %601 = vmatpush1.msra.mxu0 0.0
      %602 = vmatprep.subr.mxu0 0.0
      %603 = vmatpush1.msra.mxu0 0.0
      %604 = vmatprep.subr.mxu0 0.0
      %605 = vmatpush1.msra.mxu0 0.0
      %606 = vmatprep.subr.mxu0 0.0
      %607 = vmatpush1.msra.mxu0 0.0
      %608 = vmatprep.subr.mxu0 0.0
      %609 = vmatpush1.msra.mxu0 0.0
      %610 = vmatprep.subr.mxu0 0.0
      %611 = vmatpush1.msra.mxu0 0.0
      %612 = vmatprep.subr.mxu0 0.0
      %613 = vmatpush1.msra.mxu0 0.0
      %614 = vmatprep.subr.mxu0 0.0
      %615 = vmatpush1.msra.mxu0 0.0
      %616 = vmatprep.subr.mxu0 0.0
      %617 = vmatpush1.msra.mxu0 0.0
      %618 = vmatprep.subr.mxu0 0.0
      %619 = vmatpush1.msra.mxu0 0.0
      %620 = vmatprep.subr.mxu0 0.0
      %621 = vmatpush1.msra.mxu0 0.0
      %622 = vmatprep.subr.mxu0 0.0
      %623 = vmatpush1.msra.mxu0 0.0
      %624 = vmatprep.subr.mxu0 0.0
      %625 = vmatpush1.msra.mxu0 0.0
      %626 = vmatprep.subr.mxu0 0.0
      %627 = vmatpush1.msra.mxu0 0.0
      %628 = vmatprep.subr.mxu0 0.0
      %629 = vmatpush1.msra.mxu0 0.0
      %630 = vmatprep.mubr.f32.mxu0 0.0
      %631 = vmatmul.mubr.f32.gmra.mrb[0].mxu0 %v564
      %v632 = vpop.f32.mrb[0].mxu0
      %v633 = vadd.f32 0.0, %v632
      %v634 = vpop.f32.mrb[0].mxu0
      %635 = vdwg.mxu0
      %v637 = vsel %vm562, %v561, 0
      %639 = vmatprep.subr.mxu0 0.0
      %640 = vmatpush1.msra.mxu0 %v549
      %641 = vmatprep.subr.mxu0 0.0
      %642 = vmatpush1.msra.mxu0 0.0
      %643 = vmatprep.subr.mxu0 0.0
      %644 = vmatpush1.msra.mxu0 0.0
      %645 = vmatprep.subr.mxu0 0.0
      %646 = vmatpush1.msra.mxu0 0.0
      %647 = vmatprep.subr.mxu0 0.0
      %648 = vmatpush1.msra.mxu0 0.0
      %649 = vmatprep.subr.mxu0 0.0
      %650 = vmatpush1.msra.mxu0 0.0
      %651 = vmatprep.subr.mxu0 0.0
      %652 = vmatpush1.msra.mxu0 0.0
      %653 = vmatprep.subr.mxu0 0.0
      %654 = vmatpush1.msra.mxu0 0.0
      %655 = vmatprep.subr.mxu0 0.0
      %656 = vmatpush1.msra.mxu0 0.0
      %657 = vmatprep.subr.mxu0 0.0
      %658 = vmatpush1.msra.mxu0 0.0
      %659 = vmatprep.subr.mxu0 0.0
      %660 = vmatpush1.msra.mxu0 0.0
      %661 = vmatprep.subr.mxu0 0.0
      %662 = vmatpush1.msra.mxu0 0.0
      %663 = vmatprep.subr.mxu0 0.0
      %664 = vmatpush1.msra.mxu0 0.0
      %665 = vmatprep.subr.mxu0 0.0
      %666 = vmatpush1.msra.mxu0 0.0
      %667 = vmatprep.subr.mxu0 0.0
      %668 = vmatpush1.msra.mxu0 0.0
      %669 = vmatprep.subr.mxu0 0.0
      %670 = vmatpush1.msra.mxu0 0.0
      %671 = vmatprep.subr.mxu0 0.0
      %672 = vmatpush1.msra.mxu0 0.0
      %673 = vmatprep.subr.mxu0 0.0
      %674 = vmatpush1.msra.mxu0 0.0
      %675 = vmatprep.subr.mxu0 0.0
      %676 = vmatpush1.msra.mxu0 0.0
      %677 = vmatprep.subr.mxu0 0.0
      %678 = vmatpush1.msra.mxu0 0.0
      %679 = vmatprep.subr.mxu0 0.0
      %680 = vmatpush1.msra.mxu0 0.0
      %681 = vmatprep.subr.mxu0 0.0
      %682 = vmatpush1.msra.mxu0 0.0
      %683 = vmatprep.subr.mxu0 0.0
      %684 = vmatpush1.msra.mxu0 0.0
      %685 = vmatprep.subr.mxu0 0.0
      %686 = vmatpush1.msra.mxu0 0.0
      %687 = vmatprep.subr.mxu0 0.0
      %688 = vmatpush1.msra.mxu0 0.0
      %689 = vmatprep.subr.mxu0 0.0
      %690 = vmatpush1.msra.mxu0 0.0
      %691 = vmatprep.subr.mxu0 0.0
      %692 = vmatpush1.msra.mxu0 0.0
      %693 = vmatprep.subr.mxu0 0.0
      %694 = vmatpush1.msra.mxu0 0.0
      %695 = vmatprep.subr.mxu0 0.0
      %696 = vmatpush1.msra.mxu0 0.0
      %697 = vmatprep.subr.mxu0 0.0
      %698 = vmatpush1.msra.mxu0 0.0
      %699 = vmatprep.subr.mxu0 0.0
      %700 = vmatpush1.msra.mxu0 0.0
      %701 = vmatprep.subr.mxu0 0.0
      %702 = vmatpush1.msra.mxu0 0.0
      %703 = vmatprep.mubr.f32.mxu0 0.0
      %704 = vmatmul.mubr.f32.gmra.mrb[0].mxu0 %v637
      %v705 = vpop.f32.mrb[0].mxu0
      %v706 = vadd.f32 0.0, %v705
      %v707 = vpop.f32.mrb[0].mxu0
      %708 = vdwg.mxu0
      %v709 = vld [vmem:[%s4] sm:$0xff]
      %v710 = vld [vmem:[%s4 + $0x8] sm:$0xff]
      %v711 = vld [vmem:[%s4 + $0x10] sm:$0xff]
      %v712 = vld [vmem:[%s4 + $0x18] sm:$0xff]
      %v713 = vld [vmem:[%s4 + $0x20] sm:$0xff]
      %v714 = vld [vmem:[%s4 + $0x28] sm:$0xff]
      %v715 = vld [vmem:[%s4 + $0x30] sm:$0xff]
      %v716 = vld [vmem:[%s4 + $0x38] sm:$0xff]
      %v717 = vld [vmem:[%s4 + $0x40] sm:$0xff]
      %v718 = vld [vmem:[%s4 + $0x48] sm:$0xff]
      %v719 = vld [vmem:[%s4 + $0x50] sm:$0xff]
      %v720 = vld [vmem:[%s4 + $0x58] sm:$0xff]
      %v721 = vld [vmem:[%s4 + $0x60] sm:$0xff]
      %v722 = vld [vmem:[%s4 + $0x68] sm:$0xff]
      %v723 = vld [vmem:[%s4 + $0x70] sm:$0xff]
      %v724 = vld [vmem:[%s4 + $0x78] sm:$0xff]
      %s725 = scalar_lea.vmem %s4, 128
      %v726 = vld [vmem:[%s725] sm:$0xff]
      %v727 = vld [vmem:[%s725 + $0x8] sm:$0xff]
      %v728 = vld [vmem:[%s725 + $0x10] sm:$0xff]
      %v729 = vld [vmem:[%s725 + $0x18] sm:$0xff]
      %v730 = vld [vmem:[%s725 + $0x20] sm:$0xff]
      %v731 = vld [vmem:[%s725 + $0x28] sm:$0xff]
      %v732 = vld [vmem:[%s725 + $0x30] sm:$0xff]
      %v733 = vld [vmem:[%s725 + $0x38] sm:$0xff]
      %v734 = vld [vmem:[%s725 + $0x40] sm:$0xff]
      %v735 = vld [vmem:[%s725 + $0x48] sm:$0xff]
      %v736 = vld [vmem:[%s725 + $0x50] sm:$0xff]
      %v737 = vld [vmem:[%s725 + $0x58] sm:$0xff]
      %v738 = vld [vmem:[%s725 + $0x60] sm:$0xff]
      %v739 = vld [vmem:[%s725 + $0x68] sm:$0xff]
      %v740 = vld [vmem:[%s725 + $0x70] sm:$0xff]
      %v741 = vld [vmem:[%s725 + $0x78] sm:$0xff]
      %742 = vmatprep.subr.mxu0 0.0
      %743 = vmatpush1.msra.mxu0 %v726
      %744 = vmatprep.subr.mxu0 0.0
      %745 = vmatpush1.msra.mxu0 %v727
      %746 = vmatprep.subr.mxu0 0.0
      %747 = vmatpush1.msra.mxu0 %v728
      %748 = vmatprep.subr.mxu0 0.0
      %749 = vmatpush1.msra.mxu0 %v729
      %750 = vmatprep.subr.mxu0 0.0
      %751 = vmatpush1.msra.mxu0 %v730
      %752 = vmatprep.subr.mxu0 0.0
      %753 = vmatpush1.msra.mxu0 %v731
      %754 = vmatprep.subr.mxu0 0.0
      %755 = vmatpush1.msra.mxu0 %v732
      %756 = vmatprep.subr.mxu0 0.0
      %757 = vmatpush1.msra.mxu0 %v733
      %758 = vmatprep.subr.mxu0 0.0
      %759 = vmatpush1.msra.mxu0 %v734
      %760 = vmatprep.subr.mxu0 0.0
      %761 = vmatpush1.msra.mxu0 %v735
      %762 = vmatprep.subr.mxu0 0.0
      %763 = vmatpush1.msra.mxu0 %v736
      %764 = vmatprep.subr.mxu0 0.0
      %765 = vmatpush1.msra.mxu0 %v737
      %766 = vmatprep.subr.mxu0 0.0
      %767 = vmatpush1.msra.mxu0 %v738
      %768 = vmatprep.subr.mxu0 0.0
      %769 = vmatpush1.msra.mxu0 %v739
      %770 = vmatprep.subr.mxu0 0.0
      %771 = vmatpush1.msra.mxu0 %v740
      %772 = vmatprep.subr.mxu0 0.0
      %773 = vmatpush1.msra.mxu0 %v741
      %774 = vmatprep.subr.mxu0 0.0
      %775 = vmatpush1.msra.mxu0 0.0
      %776 = vmatprep.subr.mxu0 0.0
      %777 = vmatpush1.msra.mxu0 0.0
      %778 = vmatprep.subr.mxu0 0.0
      %779 = vmatpush1.msra.mxu0 0.0
      %780 = vmatprep.subr.mxu0 0.0
      %781 = vmatpush1.msra.mxu0 0.0
      %782 = vmatprep.subr.mxu0 0.0
      %783 = vmatpush1.msra.mxu0 0.0
      %784 = vmatprep.subr.mxu0 0.0
      %785 = vmatpush1.msra.mxu0 0.0
      %786 = vmatprep.subr.mxu0 0.0
      %787 = vmatpush1.msra.mxu0 0.0
      %788 = vmatprep.subr.mxu0 0.0
      %789 = vmatpush1.msra.mxu0 0.0
      %790 = vmatprep.subr.mxu0 0.0
      %791 = vmatpush1.msra.mxu0 0.0
      %792 = vmatprep.subr.mxu0 0.0
      %793 = vmatpush1.msra.mxu0 0.0
      %794 = vmatprep.subr.mxu0 0.0
      %795 = vmatpush1.msra.mxu0 0.0
      %796 = vmatprep.subr.mxu0 0.0
      %797 = vmatpush1.msra.mxu0 0.0
      %798 = vmatprep.subr.mxu0 0.0
      %799 = vmatpush1.msra.mxu0 0.0
      %800 = vmatprep.subr.mxu0 0.0
      %801 = vmatpush1.msra.mxu0 0.0
      %802 = vmatprep.subr.mxu0 0.0
      %803 = vmatpush1.msra.mxu0 0.0
      %804 = vmatprep.subr.mxu0 0.0
      %805 = vmatpush1.msra.mxu0 0.0
      %806 = vmatprep.mubr.f32.mxu0 0.0
      %807 = vmatmul.mubr.f32.gmra.mrb[0].mxu0 %v549
      %v808 = vpop.f32.mrb[0].mxu0
      %v809 = vadd.f32 0.0, %v808
      %v810 = vpop.f32.mrb[0].mxu0
      %811 = vdwg.mxu0
      %812 = vmatprep.subr.mxu0 0.0
      %813 = vmatpush1.msra.mxu0 %v709
      %814 = vmatprep.subr.mxu0 0.0
      %815 = vmatpush1.msra.mxu0 %v710
      %816 = vmatprep.subr.mxu0 0.0
      %817 = vmatpush1.msra.mxu0 %v711
      %818 = vmatprep.subr.mxu0 0.0
      %819 = vmatpush1.msra.mxu0 %v712
      %820 = vmatprep.subr.mxu0 0.0
      %821 = vmatpush1.msra.mxu0 %v713
      %822 = vmatprep.subr.mxu0 0.0
      %823 = vmatpush1.msra.mxu0 %v714
      %824 = vmatprep.subr.mxu0 0.0
      %825 = vmatpush1.msra.mxu0 %v715
      %826 = vmatprep.subr.mxu0 0.0
      %827 = vmatpush1.msra.mxu0 %v716
      %828 = vmatprep.subr.mxu0 0.0
      %829 = vmatpush1.msra.mxu0 %v717
      %830 = vmatprep.subr.mxu0 0.0
      %831 = vmatpush1.msra.mxu0 %v718
      %832 = vmatprep.subr.mxu0 0.0
      %833 = vmatpush1.msra.mxu0 %v719
      %834 = vmatprep.subr.mxu0 0.0
      %835 = vmatpush1.msra.mxu0 %v720
      %836 = vmatprep.subr.mxu0 0.0
      %837 = vmatpush1.msra.mxu0 %v721
      %838 = vmatprep.subr.mxu0 0.0
      %839 = vmatpush1.msra.mxu0 %v722
      %840 = vmatprep.subr.mxu0 0.0
      %841 = vmatpush1.msra.mxu0 %v723
      %842 = vmatprep.subr.mxu0 0.0
      %843 = vmatpush1.msra.mxu0 %v724
      %844 = vmatprep.subr.mxu0 0.0
      %845 = vmatpush1.msra.mxu0 0.0
      %846 = vmatprep.subr.mxu0 0.0
      %847 = vmatpush1.msra.mxu0 0.0
      %848 = vmatprep.subr.mxu0 0.0
      %849 = vmatpush1.msra.mxu0 0.0
      %850 = vmatprep.subr.mxu0 0.0
      %851 = vmatpush1.msra.mxu0 0.0
      %852 = vmatprep.subr.mxu0 0.0
      %853 = vmatpush1.msra.mxu0 0.0
      %854 = vmatprep.subr.mxu0 0.0
      %855 = vmatpush1.msra.mxu0 0.0
      %856 = vmatprep.subr.mxu0 0.0
      %857 = vmatpush1.msra.mxu0 0.0
      %858 = vmatprep.subr.mxu0 0.0
      %859 = vmatpush1.msra.mxu0 0.0
      %860 = vmatprep.subr.mxu0 0.0
      %861 = vmatpush1.msra.mxu0 0.0
      %862 = vmatprep.subr.mxu0 0.0
      %863 = vmatpush1.msra.mxu0 0.0
      %864 = vmatprep.subr.mxu0 0.0
      %865 = vmatpush1.msra.mxu0 0.0
      %866 = vmatprep.subr.mxu0 0.0
      %867 = vmatpush1.msra.mxu0 0.0
      %868 = vmatprep.subr.mxu0 0.0
      %869 = vmatpush1.msra.mxu0 0.0
      %870 = vmatprep.subr.mxu0 0.0
      %871 = vmatpush1.msra.mxu0 0.0
      %872 = vmatprep.subr.mxu0 0.0
      %873 = vmatpush1.msra.mxu0 0.0
      %874 = vmatprep.subr.mxu0 0.0
      %875 = vmatpush1.msra.mxu0 0.0
      %876 = vmatprep.mubr.f32.mxu0 0.0
      %877 = vmatmul.mubr.f32.gmra.mrb[0].mxu0 %v633
      %v878 = vpop.f32.mrb[0].mxu0
      %v879 = vadd.f32 %v809, %v878
      %v880 = vpop.f32.mrb[0].mxu0
      %881 = vdwg.mxu0
      %s882 = scalar_lea.vmem %s4, 256
      %v883 = vld [vmem:[%s882] sm:$0xff]
      %v884 = vld [vmem:[%s882 + $0x8] sm:$0xff]
      %v885 = vld [vmem:[%s882 + $0x10] sm:$0xff]
      %v886 = vld [vmem:[%s882 + $0x18] sm:$0xff]
      %v887 = vld [vmem:[%s882 + $0x20] sm:$0xff]
      %v888 = vld [vmem:[%s882 + $0x28] sm:$0xff]
      %v889 = vld [vmem:[%s882 + $0x30] sm:$0xff]
      %v890 = vld [vmem:[%s882 + $0x38] sm:$0xff]
      %v891 = vld [vmem:[%s882 + $0x40] sm:$0xff]
      %v892 = vld [vmem:[%s882 + $0x48] sm:$0xff]
      %v893 = vld [vmem:[%s882 + $0x50] sm:$0xff]
      %v894 = vld [vmem:[%s882 + $0x58] sm:$0xff]
      %v895 = vld [vmem:[%s882 + $0x60] sm:$0xff]
      %v896 = vld [vmem:[%s882 + $0x68] sm:$0xff]
      %v897 = vld [vmem:[%s882 + $0x70] sm:$0xff]
      %v898 = vld [vmem:[%s882 + $0x78] sm:$0xff]
      %899 = vmatprep.subr.mxu0 0.0
      %900 = vmatpush1.msra.mxu0 %v883
      %901 = vmatprep.subr.mxu0 0.0
      %902 = vmatpush1.msra.mxu0 %v884
      %903 = vmatprep.subr.mxu0 0.0
      %904 = vmatpush1.msra.mxu0 %v885
      %905 = vmatprep.subr.mxu0 0.0
      %906 = vmatpush1.msra.mxu0 %v886
      %907 = vmatprep.subr.mxu0 0.0
      %908 = vmatpush1.msra.mxu0 %v887
      %909 = vmatprep.subr.mxu0 0.0
      %910 = vmatpush1.msra.mxu0 %v888
      %911 = vmatprep.subr.mxu0 0.0
      %912 = vmatpush1.msra.mxu0 %v889
      %913 = vmatprep.subr.mxu0 0.0
      %914 = vmatpush1.msra.mxu0 %v890
      %915 = vmatprep.subr.mxu0 0.0
      %916 = vmatpush1.msra.mxu0 %v891
      %917 = vmatprep.subr.mxu0 0.0
      %918 = vmatpush1.msra.mxu0 %v892
      %919 = vmatprep.subr.mxu0 0.0
      %920 = vmatpush1.msra.mxu0 %v893
      %921 = vmatprep.subr.mxu0 0.0
      %922 = vmatpush1.msra.mxu0 %v894
      %923 = vmatprep.subr.mxu0 0.0
      %924 = vmatpush1.msra.mxu0 %v895
      %925 = vmatprep.subr.mxu0 0.0
      %926 = vmatpush1.msra.mxu0 %v896
      %927 = vmatprep.subr.mxu0 0.0
      %928 = vmatpush1.msra.mxu0 %v897
      %929 = vmatprep.subr.mxu0 0.0
      %930 = vmatpush1.msra.mxu0 %v898
      %931 = vmatprep.subr.mxu0 0.0
      %932 = vmatpush1.msra.mxu0 0.0
      %933 = vmatprep.subr.mxu0 0.0
      %934 = vmatpush1.msra.mxu0 0.0
      %935 = vmatprep.subr.mxu0 0.0
      %936 = vmatpush1.msra.mxu0 0.0
      %937 = vmatprep.subr.mxu0 0.0
      %938 = vmatpush1.msra.mxu0 0.0
      %939 = vmatprep.subr.mxu0 0.0
      %940 = vmatpush1.msra.mxu0 0.0
      %941 = vmatprep.subr.mxu0 0.0
      %942 = vmatpush1.msra.mxu0 0.0
      %943 = vmatprep.subr.mxu0 0.0
      %944 = vmatpush1.msra.mxu0 0.0
      %945 = vmatprep.subr.mxu0 0.0
      %946 = vmatpush1.msra.mxu0 0.0
      %947 = vmatprep.subr.mxu0 0.0
      %948 = vmatpush1.msra.mxu0 0.0
      %949 = vmatprep.subr.mxu0 0.0
      %950 = vmatpush1.msra.mxu0 0.0
      %951 = vmatprep.subr.mxu0 0.0
      %952 = vmatpush1.msra.mxu0 0.0
      %953 = vmatprep.subr.mxu0 0.0
      %954 = vmatpush1.msra.mxu0 0.0
      %955 = vmatprep.subr.mxu0 0.0
      %956 = vmatpush1.msra.mxu0 0.0
      %957 = vmatprep.subr.mxu0 0.0
      %958 = vmatpush1.msra.mxu0 0.0
      %959 = vmatprep.subr.mxu0 0.0
      %960 = vmatpush1.msra.mxu0 0.0
      %961 = vmatprep.subr.mxu0 0.0
      %962 = vmatpush1.msra.mxu0 0.0
      %963 = vmatprep.mubr.f32.mxu0 0.0
      %964 = vmatmul.mubr.f32.gmra.mrb[0].mxu0 %v706
      %v965 = vpop.f32.mrb[0].mxu0
      %v966 = vadd.f32 0.0, %v965
      %v967 = vpop.f32.mrb[0].mxu0
      %968 = vdwg.mxu0
      %v969 = vadd.f32 %v879, %v966
      %v970 = vld [vmem:[%s5] sm:$0x1]
      %v972 = vlaneseq
      %v973 = vshrl.u32 %v972, 7
      %v974 = vsub.s32 0, %v973
      %v975 = vrot.slane %v970, %v974
      %v977 = vadd.f32 %v969, %v975
      %v978 = vmax.f32 %v977, 0.0
      %979 = vst [vmem:[%s269] sm:$0xff] %v978
      %p980 = scmp.lt.s32.totalorder %s17, 1
      %s981 = scalar_select %p980, %s17, 1
      %s982 = smul.addr %s981, 8
      %s983 = scalar_lea.vmem %s6, %s982
      // Predicated region
      $region45: #{sepconv_forward.1} parent=43 // pred_check
        %p984 = pneg %p171
      $region46: #{sepconv_forward.1} parent=43 // pred_check_branch
        %986 = sbr.rel (%p984) target = $region48
      $region47: #{sepconv_forward.1} parent=43 // pred_region
        _
      $region48: #{sepconv_forward.1} parent=43 // pred_fallthru
        _
    $region44: #{sepconv_forward.1} parent=5 // pred_fallthru
      _
    %p987 = scmp.le.s32.totalorder 2, %s12
    // Predicated region
    $region49: #{sepconv_forward.1} parent=5 // pred_check
      %p988 = pneg %p987
    $region50: #{sepconv_forward.1} parent=5 // pred_check_branch
      %990 = sbr.rel (%p988) target = $region52
    $region51: #{sepconv_forward.1} parent=5 // pred_region
      %s991 = ssub.s32 %s12, 2
      // Predicated region
      $region53: #{sepconv_forward.1} parent=51 // pred_check
        %p992 = pneg %p177
      $region54: #{sepconv_forward.1} parent=51 // pred_check_branch
        %994 = sbr.rel (%p992) target = $region56
      $region55: #{sepconv_forward.1} parent=51 // pred_region
        %p995 = scmp.lt.s32.totalorder %s18, 1
        %s996 = scalar_select %p995, %s18, 1
        %s997 = smul.addr %s996, 8
        %s998 = scalar_lea.vmem %s6, %s997
      $region56: #{sepconv_forward.1} parent=51 // pred_fallthru
        _
    $region52: #{sepconv_forward.1} parent=5 // pred_fallthru
      _
  $region6: #{sepconv_forward.1} parent=0 // loop_footer
    %s16 = sadd.s32 1, %s12
  $region7: #{sepconv_forward.1} parent=0 // loop_footer_branch
    %11 = sbr.rel target = $region3
  $region8: #{sepconv_forward.1} parent=0 // loop_exit
    _

</llo_original>
